<compile_context>
chip_gen: v7x
topology: tpu7x:2x2x1
jax: 0.10.0
libtpu: 0.0.40
codegen_flags: <defaults>
</compile_context>

<pallas_src>
import math

import jax
import jax.numpy as jnp
from jax.experimental import pallas as pl
from jax.experimental.pallas import tpu as pltpu


# ---------------------------------------------------------------- kernel ----
def _drop_path_kernel(scale_ref, x_ref, o_ref):
    # scale_ref : (TN, 1)  per-row scale in f32 (0.0 dropped / 1/keep_prob kept)
    # x_ref     : (TN, TF) sublane/lane-dense activation tile
    # o_ref     : (TN, TF)
    # The multiply promotes to f32 (scale stays f32); single cast at the store.
    o_ref[...] = (x_ref[...] * scale_ref[...]).astype(o_ref.dtype)


# ---------------------------------------------------------------- tiling ----
def _round_down(x, m):
    return (x // m) * m


def _round_up(x, m):
    return ((x + m - 1) // m) * m


def _fold_factor(N, F):
    """For tiny batches, fold features into the sublane axis:
    (N, F) -> (N*K, F//K) so rows fill the 8-sublane vreg instead of padding."""
    if N >= 8 or N % 8 == 0:
        return 1
    for K in range(2, 65):
        if F % K == 0 and (N * K) % 8 == 0 and (F // K) % 128 == 0:
            return K
    return 1


def _choose_tiles(R, Wd, itemsize, *, block_bytes_target=4 << 20):
    """Byte-budgeted (sublane, lane) tile.

    Lane tile: multiple of 128 (>= 512 when possible) or the full extent.
    Sublane tile: multiple of 8 or the full extent.
    Block bytes <= block_bytes_target so pipelined VMEM (4 buffers) stays small.
    """
    # Lane (feature) tile.
    max_tf = max(512, _round_down(block_bytes_target // (8 * itemsize), 128))
    if Wd <= max_tf:
        TF = Wd                                   # full extent: always legal
    else:
        TF = _round_down(max_tf, 128)
    # Sublane (row) tile.
    max_tn = max(8, block_bytes_target // (TF * itemsize))
    if R <= max_tn:
        TN = R                                    # full extent: always legal
    else:
        TN = max(8, _round_down(max_tn, 8))
    # v7x has 2 TensorCores: give non-trivial work at least 2 parallel steps.
    if pl.cdiv(R, TN) * pl.cdiv(Wd, TF) == 1 and R * Wd * itemsize > (2 << 20):
        if Wd >= 256:
            TF = max(128, _round_down(pl.cdiv(Wd, 2), 128))
        elif R >= 16:
            TN = max(8, _round_down(pl.cdiv(R, 2), 8))
    return TN, TF


# ----------------------------------------------------------------- glue -----
def drop_path_pallas(x, scale, *, block_bytes_target=4 << 20, interpret=False):
    """out[n, ...] = x[n, ...] * scale[n], computed by a Pallas TPU kernel.

    x     : (N, ...) batch-leading array (any dtype)
    scale : (N,)     per-sample scale in f32 (0.0 or 1/keep_prob)
    """
    orig_shape = x.shape
    N = orig_shape[0]
    F = int(math.prod(orig_shape[1:]))
    itemsize = jnp.dtype(x.dtype).itemsize

    # Fold tiny batches into the sublane axis (contiguous reshape -> free).
    K = _fold_factor(N, F)
    R, Wd = N * K, F // K

    xf = x.reshape(R, Wd)                                  # lane-dense slab
    scale_f32 = scale.astype(jnp.float32)
    if K > 1:
        scale_f32 = jnp.repeat(scale_f32, K)
    scale2 = scale_f32.reshape(R, 1)                       # stays f32

    TN, TF = _choose_tiles(R, Wd, itemsize,
                           block_bytes_target=block_bytes_target)
    grid = (pl.cdiv(R, TN), pl.cdiv(Wd, TF))

    # Pipelined VMEM: 2 input + 2 output block buffers + padded scale tiles.
    block_bytes = TN * TF * itemsize
    scale_block_bytes = _round_up(TN, 8) * 128 * 4
    vmem_limit = int(min(48 << 20,
                         max(4 * block_bytes + 2 * scale_block_bytes + (1 << 20),
                             16 << 20)))

    cost = pl.CostEstimate(
        flops=R * Wd,
        transcendentals=0,
        bytes_accessed=2 * R * Wd * itemsize + R * 4,
    )

    out = pl.pallas_call(
        _drop_path_kernel,
        out_shape=jax.ShapeDtypeStruct((R, Wd), x.dtype),
        grid=grid,
        in_specs=[
            pl.BlockSpec((TN, 1), lambda i, j: (i, 0)),    # per-row scale
            pl.BlockSpec((TN, TF), lambda i, j: (i, j)),   # activation tile
        ],
        out_specs=pl.BlockSpec((TN, TF), lambda i, j: (i, j)),
        compiler_params=pltpu.CompilerParams(
            dimension_semantics=("parallel", "parallel"),
            vmem_limit_bytes=vmem_limit,
        ),
        cost_estimate=cost,
        interpret=interpret,
    )(scale2, xf)

    return out.reshape(orig_shape)


def drop_path(x, drop_prob=0.0, training=False, key=None, interpret=False):
    """Forward pass of the DropPath module (matches the PyTorch reference)."""
    if drop_prob == 0.0 or not training:
        return x                                           # identity, like torch
    keep_prob = 1.0 - drop_prob
    # Per-sample keep decision: floor(keep_prob + U[0,1)) in {0, 1}.
    u = jax.random.uniform(key, (x.shape[0],), dtype=jnp.float32)
    mask = jnp.floor(keep_prob + u)
    scale = mask / keep_prob                               # kept in f32
    return drop_path_pallas(x, scale, interpret=interpret)


# ------------------------------------------------------------------ main ----
if __name__ == "__main__":
    key = jax.random.PRNGKey(0)
    kx, kdrop, kx2 = jax.random.split(key, 3)

    # --- primary case: (N, C, H, W) = (2, 4, 16, 16), f32, training mode ---
    N, C, H, W = 2, 4, 16, 16
    drop_prob = 0.25
    x = jax.random.normal(kx, (N, C, H, W), jnp.float32)

    out = jax.block_until_ready(
        drop_path(x, drop_prob=drop_prob, training=True, key=kdrop))
    assert out.shape == (N, C, H, W), out.shape

    # pure-JAX reference using the SAME random draw
    keep_prob = 1.0 - drop_prob
    u = jax.random.uniform(kdrop, (N,), dtype=jnp.float32)
    mask = jnp.floor(keep_prob + u).reshape(N, 1, 1, 1)
    ref = x * (mask / keep_prob)
    assert jnp.allclose(out, ref, rtol=1e-6, atol=1e-6), \
        float(jnp.abs(out - ref).max())

    # --- identity paths (eval mode / drop_prob == 0) ---
    out_eval = jax.block_until_ready(
        drop_path(x, drop_prob=drop_prob, training=False))
    assert jnp.array_equal(out_eval, x)
    out_zero = jax.block_until_ready(
        drop_path(x, drop_prob=0.0, training=True, key=kdrop))
    assert jnp.array_equal(out_zero, x)

    # --- awkward shapes / dtypes: N not /8, F not /128, bf16 ---
    for shape, dtype in (((3, 5, 7, 9), jnp.float32),
                         ((5, 4, 16, 16), jnp.bfloat16)):
        xa = jax.random.normal(kx2, shape, jnp.float32).astype(dtype)
        na = shape[0]
        sa = jnp.where(jax.random.uniform(kdrop, (na,)) < keep_prob,
                       jnp.float32(1.0 / keep_prob), jnp.float32(0.0))
        oa = jax.block_until_ready(drop_path_pallas(xa, sa))
        ra = (xa.astype(jnp.float32)
              * sa.reshape((na,) + (1,) * (len(shape) - 1))).astype(dtype)
        assert oa.shape == shape and oa.dtype == dtype
        assert jnp.allclose(oa.astype(jnp.float32), ra.astype(jnp.float32),
                            rtol=1e-2, atol=1e-2)

    print("KERNEL_OK")
</pallas_src>

<mosaic_0001>
module attributes {stable_mosaic.version = 11 : i64} {
  func.func @_drop_path_kernel(%arg0: i32, %arg1: i32, %arg2: memref<8x1xf32, #tpu.memory_space<vmem>>, %arg3: memref<8x256xf32, #tpu.memory_space<vmem>>, %arg4: memref<8x256xf32, #tpu.memory_space<vmem>>) attributes {dimension_semantics = [#tpu.dimension_semantics<parallel>, #tpu.dimension_semantics<parallel>], iteration_bounds = array<i64: 1, 1>, scalar_prefetch = 0 : i64, scratch_operands = 0 : i64, tpu.core_type = #tpu.core_type<tc>, window_params = [{transform_indices = @transform_0, window_bounds = array<i64: 8, 1>}, {transform_indices = @transform_1, window_bounds = array<i64: 8, 256>}, {transform_indices = @transform_2, window_bounds = array<i64: 8, 256>}]} {
    %c0 = arith.constant 0 : index
    %c0_0 = arith.constant 0 : index
    %0 = vector.load %arg3[%c0, %c0_0] : memref<8x256xf32, #tpu.memory_space<vmem>>, vector<8x256xf32>
    %c0_1 = arith.constant 0 : index
    %c0_2 = arith.constant 0 : index
    %1 = vector.load %arg2[%c0_1, %c0_2] : memref<8x1xf32, #tpu.memory_space<vmem>>, vector<8x1xf32>
    %2 = vector.broadcast %1 : vector<8x1xf32> to vector<8x256xf32>
    %3 = arith.mulf %0, %2 : vector<8x256xf32>
    %c0_3 = arith.constant 0 : index
    %c0_4 = arith.constant 0 : index
    %4 = vector.load %arg4[%c0_3, %c0_4] : memref<8x256xf32, #tpu.memory_space<vmem>>, vector<8x256xf32>
    tpu.vector_store %arg4[%c0_3, %c0_4], %3 {strides = array<i32>} : memref<8x256xf32, #tpu.memory_space<vmem>>, vector<8x256xf32>,
    return
  }
  func.func @transform_0(%arg0: i32, %arg1: i32) -> (i32, i32) {
    %c0_i32 = arith.constant 0 : i32
    %c0_i32_0 = arith.constant 0 : i32
    return %arg0, %c0_i32 : i32, i32
  }
  func.func @transform_1(%arg0: i32, %arg1: i32) -> (i32, i32) {
    %c0_i32 = arith.constant 0 : i32
    return %arg0, %arg1 : i32, i32
  }
  func.func @transform_2(%arg0: i32, %arg1: i32) -> (i32, i32) {
    %c0_i32 = arith.constant 0 : i32
    return %arg0, %arg1 : i32, i32
  }
}

</mosaic_0001>

<llo_original>
// kernel: tpu_custom_call.1
$region0: #{tpu_custom_call.1}
  #allocation0 [shape = 'u32[]', space=smem, size = 0x4, offset = 0x4, fixed_abs, tag = 'smem constant byte address 0x4 - core index']
  #allocation1 [shape = 'u32[144,128]{1,0:T(1,128)}', space=vmem, size = 0x12000, scoped, tag = 'internal scratch']
  %s0 = inlined_call_operand.vmem [shape: f32[8,1], index: 0, kind: input, shape index: {}]
  %s1 = inlined_call_operand.hbm [shape: f32[8,256], index: 1, kind: input, shape index: {}]
  %s2 = inlined_call_operand.hbm [shape: f32[8,256], index: 2, kind: output, shape index: {}]
  %s3 = sld [smem:[#allocation0]]
  $region22: #{tpu_custom_call.1} parent=0
    _
  %s5 = ssub.s32 1, %s3
  %s6 = scalar_select 0, %s5, %s3
  $region1: #{tpu_custom_call.1} parent=0
    #allocation2 [shape = 'u8[8192]{0}', space=vmem, size = 0x2000, scoped, tag = 'input window, operand 1, single buffered']
    #allocation3 [shape = 's32[1]{0}', space=sflag, size = 0x4, scoped, tag = 'scoped memory for tpu_custom_call.1']
    #allocation4 [shape = 's32[1]{0}', space=sflag, size = 0x4, scoped, tag = 'scoped memory for tpu_custom_call.1']
    #allocation5 [shape = 'u8[8192]{0}', space=vmem, size = 0x2000, scoped, tag = 'output window, operand 0, single buffered']
    %7 = vsyncpa [#allocation3], 0
    %8 = vsyncpa [#allocation4], 0
    // Predicated region
    $region2: #{tpu_custom_call.1} parent=1 // pred_check
      _
    $region3: #{tpu_custom_call.1} parent=1 // pred_check_branch
      %10 = sbr.rel (0) target = $region5
    $region4: #{tpu_custom_call.1} parent=1 // pred_region
      _
    $region5: #{tpu_custom_call.1} parent=1 // pred_fallthru
      _
    // Predicated region
    $region6: #{tpu_custom_call.1} parent=1 // pred_check
      _
    $region7: #{tpu_custom_call.1} parent=1 // pred_check_branch
      %12 = sbr.rel (0) target = $region9
    $region8: #{tpu_custom_call.1} parent=1 // pred_region
      %s14 = ssub.s32 256, 256
      %15 = vsyncadd [#allocation3], %s14
      %s17 = sshll.u32 [#allocation2], 4
      %s18 = int_to_ptr.vmem [resolvable:$true] %s17
      %20 = dma.hbm_to_vmem [thread:$0]  %s1, 256, %s18, [#allocation3]
    $region9: #{tpu_custom_call.1} parent=1 // pred_fallthru
      _
    // Predicated region
    $region10: #{tpu_custom_call.1} parent=1 // pred_check
      _
    $region11: #{tpu_custom_call.1} parent=1 // pred_check_branch
      %22 = sbr.rel (0) target = $region13
    $region12: #{tpu_custom_call.1} parent=1 // pred_region
      %23 = dma.done [#allocation3], 256
    $region13: #{tpu_custom_call.1} parent=1 // pred_fallthru
      _
    %v24 = vld [vmem:[#allocation2] sm:$0xff]
    %v25 = vld [vmem:[#allocation2 + $0x8] sm:$0xff]
    %v26 = vld [vmem:[%s0] sm:$0xff]
    %28 = vset.pattern.permute.xlu0 0
    %29 = vperm.xlu0 %28, %v26
    %v30 = vpop.permute.xlu0 %29
    %v32 = vmul.f32 %v24, %v30
    %v33 = vmul.f32 %v25, %v30
    %34 = vst [vmem:[#allocation5] sm:$0xff] %v32
    %35 = vst [vmem:[#allocation5 + $0x8] sm:$0xff] %v33
    // Predicated region
    $region14: #{tpu_custom_call.1} parent=1 // pred_check
      _
    $region15: #{tpu_custom_call.1} parent=1 // pred_check_branch
      %37 = sbr.rel (0) target = $region17
    $region16: #{tpu_custom_call.1} parent=1 // pred_region
      %s39 = ssub.s32 256, 256
      %40 = vsyncadd [#allocation4], %s39
      %s42 = sshll.u32 [#allocation5], 4
      %s43 = int_to_ptr.vmem [resolvable:$true] %s42
      %45 = dma.vmem_to_hbm [thread:$0]  %s43, 256, %s2, [#allocation4]
    $region17: #{tpu_custom_call.1} parent=1 // pred_fallthru
      _
    // Predicated region
    $region18: #{tpu_custom_call.1} parent=1 // pred_check
      _
    $region19: #{tpu_custom_call.1} parent=1 // pred_check_branch
      %47 = sbr.rel (0) target = $region21
    $region20: #{tpu_custom_call.1} parent=1 // pred_region
      %48 = dma.done [#allocation4], 256
    $region21: #{tpu_custom_call.1} parent=1 // pred_fallthru
      _
    %49 = vsyncpa [#allocation3], 1
    %50 = vsyncpa [#allocation4], 1

</llo_original>
